<compile_context>
chip_gen: v5e
topology: v5e:2x2
jax: 0.10.0
libtpu: 0.0.40
codegen_flags: <defaults>
</compile_context>

<pallas_src>
import functools

import jax
import jax.numpy as jnp
from jax.experimental import pallas as pl
from jax.experimental.pallas import tpu as pltpu


# ------------------------------ hardware budget ------------------------------ #

def _vmem_capacity_bytes():
    try:
        return int(pltpu.get_tpu_info().vmem_capacity_bytes)
    except Exception:
        return 64 * 1024 * 1024          # conservative fallback (v7x per-TensorCore)


_VMEM_CAP = _vmem_capacity_bytes()
_VMEM_LIMIT = int(0.70 * _VMEM_CAP)      # scoped-VMEM limit handed to Mosaic
_DEFAULT_BUDGET = _VMEM_LIMIT            # working-set budget for tiling decisions


def _pick_tile(hw, bytes_per_lane, budget):
    """Largest multiple-of-128 divisor of hw whose per-step working set fits budget."""
    cands = [t for t in range(128, hw + 1, 128) if hw % t == 0]
    if not cands:
        # TODO(synk): misaligned H*W falls back to a full-extent (always legal) block;
        # pad the lane axis instead if such maps ever get large.
        return hw
    fit = [t for t in cands if t * bytes_per_lane <= budget]
    return max(fit) if fit else min(cands)


# ------------------------------ Pallas kernels ------------------------------ #

def _hardswish(x):
    # PyTorch nn.Hardswish: x * relu6(x + 3) / 6
    return x * jnp.clip(x + 3.0, 0.0, 6.0) * (1.0 / 6.0)


def _se_mlp(w1, w2, sp_max, sp_avg):
    """Shared SE MLP on both pooled vectors at once (single MXU push/pop pair)."""
    stats = jnp.concatenate([sp_max, sp_avg], axis=1)                        # (C, 2)
    h = _hardswish(jnp.dot(w1, stats, preferred_element_type=jnp.float32))   # (Cr, 2)
    o = jnp.dot(w2, h, preferred_element_type=jnp.float32)                   # (C, 2)
    return jax.nn.sigmoid(jnp.sum(o, axis=1, keepdims=True))                 # (C, 1)


def _channel_attn_fused_kernel(x_ref, w1_ref, w2_ref, ca_ref, pooled_ref):
    """Whole-image-per-batch-item path (single read of x).

    x_ref:      (1, C, HW)   activations (H*W on the lane axis)
    w1_ref:     (Cr, C)      SE conv1 weight (PyTorch (Cr, C, 1, 1) squeezed)
    w2_ref:     (C, Cr)      SE conv2 weight
    ca_ref:     (1, C, 1)    channel-attention vector
    pooled_ref: (1, 2, HW)   [channel-max, channel-mean] of x*ca
    """
    x = x_ref[0]                                             # (C, HW)
    ca = _se_mlp(w1_ref[...], w2_ref[...],
                 jnp.max(x, axis=1, keepdims=True),
                 jnp.mean(x, axis=1, keepdims=True))
    ca_ref[0] = ca
    out1 = x * ca                                            # (C, HW)
    pooled_ref[0, 0:1, :] = jnp.max(out1, axis=0, keepdims=True)
    pooled_ref[0, 1:2, :] = jnp.mean(out1, axis=0, keepdims=True)


def _channel_stats_kernel(x_ref, w1_ref, w2_ref, ca_ref, max_sc, sum_sc, *, hw_total):
    """Lane-tiled stats path: running max/sum over HW tiles; SE MLP on the last tile."""
    t = pl.program_id(1)

    @pl.when(t == 0)
    def _():
        max_sc[...] = jnp.full_like(max_sc, -jnp.inf)
        sum_sc[...] = jnp.zeros_like(sum_sc)

    x = x_ref[0]                                             # (C, T)
    max_sc[...] = jnp.maximum(max_sc[...], jnp.max(x, axis=1, keepdims=True))
    sum_sc[...] = sum_sc[...] + jnp.sum(x, axis=1, keepdims=True)

    @pl.when(t == pl.num_programs(1) - 1)
    def _():
        ca_ref[0] = _se_mlp(w1_ref[...], w2_ref[...],
                            max_sc[...], sum_sc[...] * (1.0 / hw_total))


def _channel_pool_kernel(x_ref, ca_ref, pooled_ref):
    """Per-pixel channel max/mean of x*ca (tiled fallback path only)."""
    out1 = x_ref[0] * ca_ref[0]                              # (C, T)
    pooled_ref[0, 0:1, :] = jnp.max(out1, axis=0, keepdims=True)
    pooled_ref[0, 1:2, :] = jnp.mean(out1, axis=0, keepdims=True)


def _apply_kernel(x_ref, sa_ref, ca_ref, out_ref):
    """out = x*ca*sa + x, fully fused (single lane-dense read of x, single write)."""
    x = x_ref[0]                                             # (C, T)
    out_ref[0] = ((x * ca_ref[0]) * sa_ref[0] + x).astype(out_ref.dtype)


# ------------------------------- JAX wrapper --------------------------------- #

def cbam_forward(x_nchw, params, *, kernel_size, vmem_budget_bytes=None):
    n, c, h, w = x_nchw.shape
    hw = h * w
    k = kernel_size
    cr = params['w1'].shape[0]
    budget = _DEFAULT_BUDGET if vmem_budget_bytes is None else int(vmem_budget_bytes)

    x = x_nchw.reshape(n, c, hw)          # channel-major; H*W on the 128-lane axis

    # ---- Channel attention (ca) + 2-channel pooled map ----
    # Fused single-pass kernel if the double-buffered (C, HW) block fits the
    # budget; otherwise the lane-tiled two-kernel fallback (v7x / large C*HW).
    fused_need = 2 * (c * hw + 2 * hw + 2 * c) * 4 + (1 << 16)
    if fused_need <= budget:
        ca, pooled = pl.pallas_call(
            _channel_attn_fused_kernel,
            grid=(n,),
            in_specs=[
                pl.BlockSpec((1, c, hw), lambda b: (b, 0, 0)),
                pl.BlockSpec((cr, c), lambda b: (0, 0)),
                pl.BlockSpec((c, cr), lambda b: (0, 0)),
            ],
            out_specs=[
                pl.BlockSpec((1, c, 1), lambda b: (b, 0, 0)),
                pl.BlockSpec((1, 2, hw), lambda b: (b, 0, 0)),
            ],
            out_shape=(
                jax.ShapeDtypeStruct((n, c, 1), jnp.float32),
                jax.ShapeDtypeStruct((n, 2, hw), jnp.float32),
            ),
            compiler_params=pltpu.CompilerParams(
                dimension_semantics=("parallel",),
                vmem_limit_bytes=_VMEM_LIMIT),
        )(x, params['w1'], params['w2'])
    else:
        # Pass 1: tiled global max/sum (scratch-carried) -> SE MLP -> ca.
        t_stats = _pick_tile(hw, bytes_per_lane=2 * c * 4, budget=budget // 2)
        ca = pl.pallas_call(
            functools.partial(_channel_stats_kernel, hw_total=float(hw)),
            grid=(n, hw // t_stats),
            in_specs=[
                pl.BlockSpec((1, c, t_stats), lambda b, t: (b, 0, t)),
                pl.BlockSpec((cr, c), lambda b, t: (0, 0)),
                pl.BlockSpec((c, cr), lambda b, t: (0, 0)),
            ],
            out_specs=pl.BlockSpec((1, c, 1), lambda b, t: (b, 0, 0)),
            out_shape=jax.ShapeDtypeStruct((n, c, 1), jnp.float32),
            scratch_shapes=[pltpu.VMEM((c, 1), jnp.float32),
                            pltpu.VMEM((c, 1), jnp.float32)],
            compiler_params=pltpu.CompilerParams(
                dimension_semantics=("parallel", "arbitrary"),
                vmem_limit_bytes=_VMEM_LIMIT),
        )(x, params['w1'], params['w2'])

        # Pass 2: per-pixel channel max/mean of x*ca, lane-tiled.
        t_pool = _pick_tile(hw, bytes_per_lane=2 * (c + 8) * 4, budget=budget // 2)
        pooled = pl.pallas_call(
            _channel_pool_kernel,
            grid=(n, hw // t_pool),
            in_specs=[
                pl.BlockSpec((1, c, t_pool), lambda b, t: (b, 0, t)),
                pl.BlockSpec((1, c, 1), lambda b, t: (b, 0, 0)),
            ],
            out_specs=pl.BlockSpec((1, 2, t_pool), lambda b, t: (b, 0, t)),
            out_shape=jax.ShapeDtypeStruct((n, 2, hw), jnp.float32),
            compiler_params=pltpu.CompilerParams(
                dimension_semantics=("parallel", "parallel"),
                vmem_limit_bytes=_VMEM_LIMIT),
        )(x, ca)

    # ---- Glue: KxK spatial-attention conv on the tiny 2-channel pooled map ----
    # Replaces the old materialized (N, 2*K*K, HW) im2col with a single (N,1,HW)
    # sa row (the dominant HBM-traffic fix from the perf review).
    # TODO(synk): fold this conv into the apply kernel with a halo'd pooled block
    # and pltpu.roll-based shifted MACs to drop the (N,1,HW) round trip too.
    wt = params['w_sa'].reshape(1, 2, k, k)
    sa = jax.lax.conv_general_dilated(
        pooled.reshape(n, 2, h, w), wt, window_strides=(1, 1),
        padding=[(k // 2, k // 2)] * 2,
        dimension_numbers=('NCHW', 'OIHW', 'NCHW'))
    sa = jax.nn.sigmoid(sa + params['b_sa'].reshape(1, 1, 1, 1)).reshape(n, 1, hw)

    # ---- Apply kernel: out = x*ca*sa + x ----
    t_app = _pick_tile(hw, bytes_per_lane=2 * (2 * c + 8) * 4, budget=budget // 2)
    out = pl.pallas_call(
        _apply_kernel,
        grid=(n, hw // t_app),
        in_specs=[
            pl.BlockSpec((1, c, t_app), lambda b, t: (b, 0, t)),
            pl.BlockSpec((1, 1, t_app), lambda b, t: (b, 0, t)),
            pl.BlockSpec((1, c, 1), lambda b, t: (b, 0, 0)),
        ],
        out_specs=pl.BlockSpec((1, c, t_app), lambda b, t: (b, 0, t)),
        out_shape=jax.ShapeDtypeStruct((n, c, hw), jnp.float32),
        compiler_params=pltpu.CompilerParams(
            dimension_semantics=("parallel", "parallel"),
            vmem_limit_bytes=_VMEM_LIMIT),
    )(x, sa, ca)

    return out.reshape(n, c, h, w)


# ----------------------- parameters & pure-JAX reference --------------------- #

def init_params(key, channel, reduction, kernel_size):
    k1, k2, k3, k4 = jax.random.split(key, 4)
    cr = max(channel // reduction, 1)
    kk2 = 2 * kernel_size * kernel_size
    return {
        # SE 1x1 convs (bias=False), stored in PyTorch (Cout, Cin) layout.
        'w1': 0.3 * jax.random.normal(k1, (cr, channel), jnp.float32),
        'w2': 0.3 * jax.random.normal(k2, (channel, cr), jnp.float32),
        # SpatialAttention KxK conv: (1, 2, K, K) flattened channel-major, plus bias.
        'w_sa': 0.3 * jax.random.normal(k3, (1, kk2), jnp.float32),
        'b_sa': 0.1 * jax.random.normal(k4, (1, 1), jnp.float32),
    }


def cbam_reference(x, params, kernel_size):
    """Plain-JAX CBAMBlock forward (NCHW) for correctness checking."""
    k = kernel_size
    sp_max = jnp.max(x, axis=(2, 3))                     # (N, C)
    sp_avg = jnp.mean(x, axis=(2, 3))

    def se(v):
        hid = v @ params['w1'].T
        hid = hid * jnp.clip(hid + 3.0, 0.0, 6.0) / 6.0
        return hid @ params['w2'].T

    ca = jax.nn.sigmoid(se(sp_max) + se(sp_avg))[:, :, None, None]
    out = x * ca
    m = jnp.concatenate([jnp.max(out, axis=1, keepdims=True),
                         jnp.mean(out, axis=1, keepdims=True)], axis=1)   # (N,2,H,W)
    wt = params['w_sa'].reshape(1, 2, k, k)
    sa = jax.lax.conv_general_dilated(
        m, wt, window_strides=(1, 1), padding=[(k // 2, k // 2)] * 2,
        dimension_numbers=('NCHW', 'OIHW', 'NCHW'))
    sa = jax.nn.sigmoid(sa + params['b_sa'].reshape(1, 1, 1, 1))
    return out * sa + x


if __name__ == "__main__":
    key = jax.random.PRNGKey(0)
    kx, kp = jax.random.split(key)

    # Small config consistent with the module: CBAMBlock(channel=32, reduction=4,
    # kernel_size=7) on a (2, 32, 16, 16) input (H*W = 256 keeps the lane axis
    # a multiple of 128; the same layout is lane-dense at the channel=512 defaults).
    N, C, H, W = 2, 32, 16, 16
    reduction, kernel_size = 4, 7

    x = jax.random.normal(kx, (N, C, H, W), jnp.float32)
    params = init_params(kp, C, reduction, kernel_size)
    ref = cbam_reference(x, params, kernel_size)

    # Default path (fused whole-image channel-attention kernel).
    fwd = jax.jit(functools.partial(cbam_forward, kernel_size=kernel_size))
    out = fwd(x, params)
    jax.block_until_ready(out)
    assert out.shape == (N, C, H, W), out.shape
    assert bool(jnp.all(jnp.isfinite(out)))
    err = float(jnp.max(jnp.abs(out - ref)))
    assert err < 1e-4, f"fused path mismatch vs reference: {err}"

    # Force the lane-tiled fallback (exercises the v7x / large-C*HW code path).
    fwd_tiled = jax.jit(functools.partial(cbam_forward, kernel_size=kernel_size,
                                          vmem_budget_bytes=64 * 1024))
    out_t = fwd_tiled(x, params)
    jax.block_until_ready(out_t)
    err_t = float(jnp.max(jnp.abs(out_t - ref)))
    assert err_t < 1e-4, f"tiled path mismatch vs reference: {err_t}"

    print("KERNEL_OK")
</pallas_src>

<mosaic_0001>
module attributes {stable_mosaic.version = 11 : i64} {
  func.func @_channel_attn_fused_kernel(%arg0: i32, %arg1: memref<1x32x256xf32, #tpu.memory_space<vmem>>, %arg2: memref<8x32xf32, #tpu.memory_space<vmem>>, %arg3: memref<32x8xf32, #tpu.memory_space<vmem>>, %arg4: memref<1x32x1xf32, #tpu.memory_space<vmem>>, %arg5: memref<1x2x256xf32, #tpu.memory_space<vmem>>) attributes {dimension_semantics = [#tpu.dimension_semantics<parallel>], iteration_bounds = array<i64: 2>, scalar_prefetch = 0 : i64, scratch_operands = 0 : i64, tpu.core_type = #tpu.core_type<tc>, window_params = [{transform_indices = @transform_0, window_bounds = array<i64: 1, 32, 256>}, {pipeline_mode = #tpu.pipeline_mode<synchronous>, transform_indices = @transform_1, window_bounds = array<i64: 8, 32>}, {pipeline_mode = #tpu.pipeline_mode<synchronous>, transform_indices = @transform_2, window_bounds = array<i64: 32, 8>}, {transform_indices = @transform_3, window_bounds = array<i64: 1, 32, 1>}, {transform_indices = @transform_4, window_bounds = array<i64: 1, 2, 256>}]} {
    %c0 = arith.constant 0 : index
    %c0_0 = arith.constant 0 : index
    %c0_1 = arith.constant 0 : index
    %0 = vector.load %arg1[%c0, %c0_0, %c0_1] : memref<1x32x256xf32, #tpu.memory_space<vmem>>, vector<1x32x256xf32>
    %1 = vector.shape_cast %0 : vector<1x32x256xf32> to vector<32x256xf32>
    %c0_2 = arith.constant 0 : index
    %c0_3 = arith.constant 0 : index
    %2 = vector.load %arg2[%c0_2, %c0_3] : memref<8x32xf32, #tpu.memory_space<vmem>>, vector<8x32xf32>
    %c0_4 = arith.constant 0 : index
    %c0_5 = arith.constant 0 : index
    %3 = vector.load %arg3[%c0_4, %c0_5] : memref<32x8xf32, #tpu.memory_space<vmem>>, vector<32x8xf32>
    %cst = arith.constant dense<0xFF800000> : vector<32xf32>
    %4 = vector.multi_reduction <maximumf>, %1, %cst [1] : vector<32x256xf32> to vector<32xf32>
    %5 = vector.shape_cast %4 : vector<32xf32> to vector<32x1xf32>
    %cst_6 = arith.constant dense<0.000000e+00> : vector<32xf32>
    %6 = vector.multi_reduction <add>, %1, %cst_6 [1] : vector<32x256xf32> to vector<32xf32>
    %7 = vector.shape_cast %6 : vector<32xf32> to vector<32x1xf32>
    %cst_7 = arith.constant 2.560000e+02 : f32
    %8 = vector.broadcast %cst_7 : f32 to vector<32x1xf32>
    %9 = arith.divf %7, %8 : vector<32x1xf32>
    %10 = tpu.concatenate %5, %9 in 1 : vector<32x1xf32>, vector<32x1xf32> -> vector<32x2xf32>
    %cst_8 = arith.constant dense<0.000000e+00> : vector<8x2xf32>
    %11 = tpu.matmul %2, %10, %cst_8 {dimension_numbers = #tpu.dot_dimension_numbers<[1], [0], [0], [1], [0, 0, 1, 1], [], []>} : vector<8x32xf32>, vector<32x2xf32>, vector<8x2xf32> -> vector<8x2xf32>
    %cst_9 = arith.constant 3.000000e+00 : f32
    %12 = vector.broadcast %cst_9 : f32 to vector<8x2xf32>
    %13 = arith.addf %11, %12 : vector<8x2xf32>
    %cst_10 = arith.constant 0.000000e+00 : f32
    %cst_11 = arith.constant 6.000000e+00 : f32
    %14 = vector.broadcast %cst_10 : f32 to vector<8x2xf32>
    %15 = arith.maximumf %14, %13 : vector<8x2xf32>
    %16 = vector.broadcast %cst_11 : f32 to vector<8x2xf32>
    %17 = arith.minimumf %16, %15 : vector<8x2xf32>
    %18 = arith.mulf %11, %17 : vector<8x2xf32>
    %cst_12 = arith.constant 0.166666672 : f32
    %19 = vector.broadcast %cst_12 : f32 to vector<8x2xf32>
    %20 = arith.mulf %18, %19 : vector<8x2xf32>
    %cst_13 = arith.constant dense<0.000000e+00> : vector<32x2xf32>
    %21 = tpu.matmul %3, %20, %cst_13 {dimension_numbers = #tpu.dot_dimension_numbers<[1], [0], [0], [1], [0, 0, 1, 1], [], []>} : vector<32x8xf32>, vector<8x2xf32>, vector<32x2xf32> -> vector<32x2xf32>
    %cst_14 = arith.constant dense<0.000000e+00> : vector<32xf32>
    %22 = vector.multi_reduction <add>, %21, %cst_14 [1] : vector<32x2xf32> to vector<32xf32>
    %23 = vector.shape_cast %22 : vector<32xf32> to vector<32x1xf32>
    %24 = arith.negf %23 : vector<32x1xf32>
    %25 = math.exp %24 : vector<32x1xf32>
    %cst_15 = arith.constant 1.000000e+00 : f32
    %26 = vector.broadcast %cst_15 : f32 to vector<32x1xf32>
    %27 = arith.addf %26, %25 : vector<32x1xf32>
    %28 = arith.divf %26, %27 : vector<32x1xf32>
    %c0_16 = arith.constant 0 : index
    %c0_17 = arith.constant 0 : index
    %c0_18 = arith.constant 0 : index
    %29 = vector.load %arg4[%c0_16, %c0_17, %c0_18] : memref<1x32x1xf32, #tpu.memory_space<vmem>>, vector<1x32x1xf32>
    %30 = vector.shape_cast %29 : vector<1x32x1xf32> to vector<32x1xf32>
    %31 = vector.shape_cast %28 : vector<32x1xf32> to vector<1x32x1xf32>
    tpu.vector_store %arg4[%c0_16, %c0_17, %c0_18], %31 {strides = array<i32>} : memref<1x32x1xf32, #tpu.memory_space<vmem>>, vector<1x32x1xf32>,
    %32 = vector.broadcast %28 : vector<32x1xf32> to vector<32x256xf32>
    %33 = arith.mulf %1, %32 : vector<32x256xf32>
    %cst_19 = arith.constant dense<0xFF800000> : vector<256xf32>
    %34 = vector.multi_reduction <maximumf>, %33, %cst_19 [0] : vector<32x256xf32> to vector<256xf32>
    %35 = vector.shape_cast %34 : vector<256xf32> to vector<1x256xf32>
    %c0_20 = arith.constant 0 : index
    %c0_21 = arith.constant 0 : index
    %c0_22 = arith.constant 0 : index
    %36 = vector.load %arg5[%c0_20, %c0_21, %c0_22] : memref<1x2x256xf32, #tpu.memory_space<vmem>>, vector<1x1x256xf32>
    %37 = vector.shape_cast %36 : vector<1x1x256xf32> to vector<1x256xf32>
    %38 = vector.shape_cast %35 : vector<1x256xf32> to vector<1x1x256xf32>
    tpu.vector_store %arg5[%c0_20, %c0_21, %c0_22], %38 {strides = array<i32>} : memref<1x2x256xf32, #tpu.memory_space<vmem>>, vector<1x1x256xf32>,
    %cst_23 = arith.constant dense<0.000000e+00> : vector<256xf32>
    %39 = vector.multi_reduction <add>, %33, %cst_23 [0] : vector<32x256xf32> to vector<256xf32>
    %40 = vector.shape_cast %39 : vector<256xf32> to vector<1x256xf32>
    %cst_24 = arith.constant 3.200000e+01 : f32
    %41 = vector.broadcast %cst_24 : f32 to vector<1x256xf32>
    %42 = arith.divf %40, %41 : vector<1x256xf32>
    %c0_25 = arith.constant 0 : index
    %c1 = arith.constant 1 : index
    %c0_26 = arith.constant 0 : index
    %43 = vector.load %arg5[%c0_25, %c1, %c0_26] : memref<1x2x256xf32, #tpu.memory_space<vmem>>, vector<1x1x256xf32>
    %44 = vector.shape_cast %43 : vector<1x1x256xf32> to vector<1x256xf32>
    %45 = vector.shape_cast %42 : vector<1x256xf32> to vector<1x1x256xf32>
    tpu.vector_store %arg5[%c0_25, %c1, %c0_26], %45 {strides = array<i32>} : memref<1x2x256xf32, #tpu.memory_space<vmem>>, vector<1x1x256xf32>,
    return
  }
  func.func @transform_0(%arg0: i32) -> (i32, i32, i32) {
    %c0_i32 = arith.constant 0 : i32
    %c0_i32_0 = arith.constant 0 : i32
    %c0_i32_1 = arith.constant 0 : i32
    return %arg0, %c0_i32, %c0_i32_0 : i32, i32, i32
  }
  func.func @transform_1(%arg0: i32) -> (i32, i32) {
    %c0_i32 = arith.constant 0 : i32
    %c0_i32_0 = arith.constant 0 : i32
    %c0_i32_1 = arith.constant 0 : i32
    return %c0_i32, %c0_i32_0 : i32, i32
  }
  func.func @transform_2(%arg0: i32) -> (i32, i32) {
    %c0_i32 = arith.constant 0 : i32
    %c0_i32_0 = arith.constant 0 : i32
    %c0_i32_1 = arith.constant 0 : i32
    return %c0_i32, %c0_i32_0 : i32, i32
  }
  func.func @transform_3(%arg0: i32) -> (i32, i32, i32) {
    %c0_i32 = arith.constant 0 : i32
    %c0_i32_0 = arith.constant 0 : i32
    %c0_i32_1 = arith.constant 0 : i32
    return %arg0, %c0_i32, %c0_i32_0 : i32, i32, i32
  }
  func.func @transform_4(%arg0: i32) -> (i32, i32, i32) {
    %c0_i32 = arith.constant 0 : i32
    %c0_i32_0 = arith.constant 0 : i32
    %c0_i32_1 = arith.constant 0 : i32
    return %arg0, %c0_i32, %c0_i32_0 : i32, i32, i32
  }
}

module attributes {stable_mosaic.version = 11 : i64} {
  func.func @_apply_kernel(%arg0: i32, %arg1: i32, %arg2: memref<1x32x256xf32, #tpu.memory_space<vmem>>, %arg3: memref<1x1x256xf32, #tpu.memory_space<vmem>>, %arg4: memref<1x32x1xf32, #tpu.memory_space<vmem>>, %arg5: memref<1x32x256xf32, #tpu.memory_space<vmem>>) attributes {dimension_semantics = [#tpu.dimension_semantics<parallel>, #tpu.dimension_semantics<parallel>], iteration_bounds = array<i64: 2, 1>, scalar_prefetch = 0 : i64, scratch_operands = 0 : i64, tpu.core_type = #tpu.core_type<tc>, window_params = [{transform_indices = @transform_0, window_bounds = array<i64: 1, 32, 256>}, {transform_indices = @transform_1, window_bounds = array<i64: 1, 1, 256>}, {transform_indices = @transform_2, window_bounds = array<i64: 1, 32, 1>}, {transform_indices = @transform_3, window_bounds = array<i64: 1, 32, 256>}]} {
    %c0 = arith.constant 0 : index
    %c0_0 = arith.constant 0 : index
    %c0_1 = arith.constant 0 : index
    %0 = vector.load %arg2[%c0, %c0_0, %c0_1] : memref<1x32x256xf32, #tpu.memory_space<vmem>>, vector<1x32x256xf32>
    %1 = vector.shape_cast %0 : vector<1x32x256xf32> to vector<32x256xf32>
    %c0_2 = arith.constant 0 : index
    %c0_3 = arith.constant 0 : index
    %c0_4 = arith.constant 0 : index
    %2 = vector.load %arg4[%c0_2, %c0_3, %c0_4] : memref<1x32x1xf32, #tpu.memory_space<vmem>>, vector<1x32x1xf32>
    %3 = vector.shape_cast %2 : vector<1x32x1xf32> to vector<32x1xf32>
    %4 = vector.broadcast %3 : vector<32x1xf32> to vector<32x256xf32>
    %5 = arith.mulf %1, %4 : vector<32x256xf32>
    %c0_5 = arith.constant 0 : index
    %c0_6 = arith.constant 0 : index
    %c0_7 = arith.constant 0 : index
    %6 = vector.load %arg3[%c0_5, %c0_6, %c0_7] : memref<1x1x256xf32, #tpu.memory_space<vmem>>, vector<1x1x256xf32>
    %7 = vector.shape_cast %6 : vector<1x1x256xf32> to vector<1x256xf32>
    %8 = vector.broadcast %7 : vector<1x256xf32> to vector<32x256xf32>
    %9 = arith.mulf %5, %8 : vector<32x256xf32>
    %10 = arith.addf %9, %1 : vector<32x256xf32>
    %c0_8 = arith.constant 0 : index
    %c0_9 = arith.constant 0 : index
    %c0_10 = arith.constant 0 : index
    %11 = vector.load %arg5[%c0_8, %c0_9, %c0_10] : memref<1x32x256xf32, #tpu.memory_space<vmem>>, vector<1x32x256xf32>
    %12 = vector.shape_cast %11 : vector<1x32x256xf32> to vector<32x256xf32>
    %13 = vector.shape_cast %10 : vector<32x256xf32> to vector<1x32x256xf32>
    tpu.vector_store %arg5[%c0_8, %c0_9, %c0_10], %13 {strides = array<i32>} : memref<1x32x256xf32, #tpu.memory_space<vmem>>, vector<1x32x256xf32>,
    return
  }
  func.func @transform_0(%arg0: i32, %arg1: i32) -> (i32, i32, i32) {
    %c0_i32 = arith.constant 0 : i32
    %c0_i32_0 = arith.constant 0 : i32
    return %arg0, %c0_i32, %arg1 : i32, i32, i32
  }
  func.func @transform_1(%arg0: i32, %arg1: i32) -> (i32, i32, i32) {
    %c0_i32 = arith.constant 0 : i32
    %c0_i32_0 = arith.constant 0 : i32
    return %arg0, %c0_i32, %arg1 : i32, i32, i32
  }
  func.func @transform_2(%arg0: i32, %arg1: i32) -> (i32, i32, i32) {
    %c0_i32 = arith.constant 0 : i32
    %c0_i32_0 = arith.constant 0 : i32
    %c0_i32_1 = arith.constant 0 : i32
    return %arg0, %c0_i32, %c0_i32_0 : i32, i32, i32
  }
  func.func @transform_3(%arg0: i32, %arg1: i32) -> (i32, i32, i32) {
    %c0_i32 = arith.constant 0 : i32
    %c0_i32_0 = arith.constant 0 : i32
    return %arg0, %c0_i32, %arg1 : i32, i32, i32
  }
}

</mosaic_0001>

<llo_original>
// kernel: cbam_forward.3
$region0: #{cbam_forward.3}
  #allocation0 [shape = 'u32[]', space=smem, size = 0x4, offset = 0x4, fixed_abs, tag = 'smem constant byte address 0x4 - core index']
  #allocation1 [shape = 'u32[72,128]{1,0:T(1,128)}', space=vmem, size = 0x9000, scoped, tag = 'internal scratch']
  %s0 = inlined_call_operand.vmem [shape: f32[2,32,256], index: 0, kind: input, shape index: {}]
  %s1 = inlined_call_operand.vmem [shape: f32[2,1,256], index: 1, kind: input, shape index: {}]
  %s2 = inlined_call_operand.vmem [shape: f32[2,32,1], index: 2, kind: input, shape index: {}]
  %s3 = inlined_call_operand.vmem [shape: f32[2,32,256], index: 3, kind: output, shape index: {}]
  %s4 = sld [smem:[#allocation0]]
  $region45: #{cbam_forward.3} parent=0
    _
  %s6 = ssub.s32 1, %s4
  %s7 = scalar_select 0, %s6, %s4
  loop: start=0, step=1, limit=4
  $region2: #{cbam_forward.3} parent=0 // loop_pre_header
    _
  $region3: #{cbam_forward.3} parent=0 // loop_header
    %s9 = sphi 0, %s13
    %p10 = scmp.ge.s32.totalorder %s9, 4
    %s16 = sphi 0, %s28
    %s17 = sphi 0, %s24
    %s18 = sphi 0, %s16
    %s19 = sphi 0, %s17
    %s20 = sphi 0, %s18
    %s21 = sphi 0, %s19
    %s33 = sphi 0, %s35
    %s36 = sphi 0, %s33
    %s37 = sphi 0, %s36
    %s53 = sphi 0, %s37
    %s61 = sphi 0, %s63
    %s64 = sphi 0, %s61
    %s65 = sphi 0, %s64
    %s81 = sphi 0, %s65
    %s87 = sphi 0, %s89
    %s90 = sphi 0, %s87
    %s91 = sphi 0, %s90
    %s107 = sphi 0, %s91
    %s115 = sphi 0, %s117
    %s118 = sphi 0, %s115
    %s119 = sphi 0, %s118
    %s135 = sphi 0, %s119
  $region4: #{cbam_forward.3} parent=0 // loop_header_branch
    %12 = sbr.rel (%p10) target = $region8
  $region5: #{cbam_forward.3} parent=0 // loop_body
    %s14 = ssub.s32 %s9, 1
    %s15 = ssub.s32 %s9, 2
    %s22 = sadd.s32 1, %s17
    %p23 = scmp.ge.s32.totalorder %s22, 1
    %s24 = scalar_select %p23, 0, %s22
    %s25 = sadd.s32 1, %s16
    %s26 = scalar_select %p23, %s25, %s16
    %p27 = scmp.ge.s32.totalorder %s26, 2
    %s28 = scalar_select %p27, 0, %s26
    %s29 = ssub.s32 %s16, %s28
    %s30 = ssub.s32 %s17, %s24
    %s31 = sor.u32 %s29, %s30
    %p32 = scmp.eq.s32.totalorder %s31, 0
    %s34 = sadd.s32 %s33, 1
    %s35 = scalar_select %p32, %s33, %s34
    %p38 = pneg %p32
    %p39 = scmp.eq.s32.totalorder %s9, 1
    %p40 = por %p38, %p39
    %p41 = scmp.ne.s32.totalorder %s33, %s36
    %p42 = scmp.eq.s32.totalorder %s9, 0
    %p43 = por %p41, %p42
    %p44 = scmp.ne.s32.totalorder %s33, %s36
    %p45 = scmp.eq.s32.totalorder %s14, 1
    %p46 = por %p44, %p45
    %p47 = scmp.ne.s32.totalorder %s36, %s37
    %p48 = scmp.eq.s32.totalorder %s14, 0
    %p49 = por %p47, %p48
    %p50 = scmp.ne.s32.totalorder %s36, %s37
    %p51 = scmp.eq.s32.totalorder %s15, 1
    %p52 = por %p50, %p51
    %p54 = scmp.ne.s32.totalorder %s37, %s53
    %p55 = scmp.eq.s32.totalorder %s15, 0
    %p56 = por %p54, %p55
    %s57 = ssub.s32 %s16, %s28
    %s58 = ssub.s32 %s17, %s24
    %s59 = sor.u32 %s57, %s58
    %p60 = scmp.eq.s32.totalorder %s59, 0
    %s62 = sadd.s32 %s61, 1
    %s63 = scalar_select %p60, %s61, %s62
    %p66 = pneg %p60
    %p67 = scmp.eq.s32.totalorder %s9, 1
    %p68 = por %p66, %p67
    %p69 = scmp.ne.s32.totalorder %s61, %s64
    %p70 = scmp.eq.s32.totalorder %s9, 0
    %p71 = por %p69, %p70
    %p72 = scmp.ne.s32.totalorder %s61, %s64
    %p73 = scmp.eq.s32.totalorder %s14, 1
    %p74 = por %p72, %p73
    %p75 = scmp.ne.s32.totalorder %s64, %s65
    %p76 = scmp.eq.s32.totalorder %s14, 0
    %p77 = por %p75, %p76
    %p78 = scmp.ne.s32.totalorder %s64, %s65
    %p79 = scmp.eq.s32.totalorder %s15, 1
    %p80 = por %p78, %p79
    %p82 = scmp.ne.s32.totalorder %s65, %s81
    %p83 = scmp.eq.s32.totalorder %s15, 0
    %p84 = por %p82, %p83
    %s85 = ssub.s32 %s16, %s28
    %p86 = scmp.eq.s32.totalorder %s85, 0
    %s88 = sadd.s32 %s87, 1
    %s89 = scalar_select %p86, %s87, %s88
    %p92 = pneg %p86
    %p93 = scmp.eq.s32.totalorder %s9, 1
    %p94 = por %p92, %p93
    %p95 = scmp.ne.s32.totalorder %s87, %s90
    %p96 = scmp.eq.s32.totalorder %s9, 0
    %p97 = por %p95, %p96
    %p98 = scmp.ne.s32.totalorder %s87, %s90
    %p99 = scmp.eq.s32.totalorder %s14, 1
    %p100 = por %p98, %p99
    %p101 = scmp.ne.s32.totalorder %s90, %s91
    %p102 = scmp.eq.s32.totalorder %s14, 0
    %p103 = por %p101, %p102
    %p104 = scmp.ne.s32.totalorder %s90, %s91
    %p105 = scmp.eq.s32.totalorder %s15, 1
    %p106 = por %p104, %p105
    %p108 = scmp.ne.s32.totalorder %s91, %s107
    %p109 = scmp.eq.s32.totalorder %s15, 0
    %p110 = por %p108, %p109
    %s111 = ssub.s32 %s16, %s28
    %s112 = ssub.s32 %s17, %s24
    %s113 = sor.u32 %s111, %s112
    %p114 = scmp.eq.s32.totalorder %s113, 0
    %s116 = sadd.s32 %s115, 1
    %s117 = scalar_select %p114, %s115, %s116
    %p120 = pneg %p114
    %p121 = scmp.eq.s32.totalorder %s9, 1
    %p122 = por %p120, %p121
    %p123 = scmp.ne.s32.totalorder %s115, %s118
    %p124 = scmp.eq.s32.totalorder %s9, 0
    %p125 = por %p123, %p124
    %p126 = scmp.ne.s32.totalorder %s115, %s118
    %p127 = scmp.eq.s32.totalorder %s14, 1
    %p128 = por %p126, %p127
    %p129 = scmp.ne.s32.totalorder %s118, %s119
    %p130 = scmp.eq.s32.totalorder %s14, 0
    %p131 = por %p129, %p130
    %p132 = scmp.ne.s32.totalorder %s118, %s119
    %p133 = scmp.eq.s32.totalorder %s15, 1
    %p134 = por %p132, %p133
    %p136 = scmp.ne.s32.totalorder %s119, %s135
    %p137 = scmp.eq.s32.totalorder %s15, 0
    %p138 = por %p136, %p137
    %p139 = scmp.le.s32.totalorder 1, %s9
    %p140 = scmp.lt.s32.totalorder %s9, 3
    %p141 = pnand %p139, %p140
    %p142 = pneg %p141
    // Predicated region
    $region9: #{cbam_forward.3} parent=5 // pred_check
      _
    $region10: #{cbam_forward.3} parent=5 // pred_check_branch
      %144 = sbr.rel (%p141) target = $region12
    $region11: #{cbam_forward.3} parent=5 // pred_region
      %s145 = ssub.s32 %s9, 1
    $region12: #{cbam_forward.3} parent=5 // pred_fallthru
      _
    %p146 = scmp.lt.s32.totalorder %s9, 2
    // Predicated region
    $region13: #{cbam_forward.3} parent=5 // pred_check
      %p147 = pneg %p146
    $region14: #{cbam_forward.3} parent=5 // pred_check_branch
      %149 = sbr.rel (%p147) target = $region16
    $region15: #{cbam_forward.3} parent=5 // pred_region
      // Predicated region
      $region17: #{cbam_forward.3} parent=15 // pred_check
        %p150 = pneg %p43
      $region18: #{cbam_forward.3} parent=15 // pred_check_branch
        %152 = sbr.rel (%p150) target = $region20
      $region19: #{cbam_forward.3} parent=15 // pred_region
        %s153 = smul.u32 2, %s17
        %p154 = scmp.lt.s32.totalorder %s16, 1
        %s155 = scalar_select %p154, %s16, 1
        %p156 = scmp.lt.s32.totalorder %s153, 1
        %s157 = scalar_select %p156, %s153, 1
        %s158 = smul.addr %s155, 8
        %s159 = sadd.s32 %s157, %s158
        %s160 = smul.addr %s159, 8
        %s161 = scalar_lea.vmem %s0, %s160
        %s162 = smul.u32 2, %s17
      $region20: #{cbam_forward.3} parent=15 // pred_fallthru
        _
      // Predicated region
      $region21: #{cbam_forward.3} parent=15 // pred_check
        %p163 = pneg %p71
      $region22: #{cbam_forward.3} parent=15 // pred_check_branch
        %165 = sbr.rel (%p163) target = $region24
      $region23: #{cbam_forward.3} parent=15 // pred_region
        %s166 = smul.u32 2, %s17
        %p167 = scmp.lt.s32.totalorder %s16, 1
        %s168 = scalar_select %p167, %s16, 1
        %p169 = scmp.lt.s32.totalorder %s166, 1
        %s170 = scalar_select %p169, %s166, 1
        %s171 = smul.addr %s168, 2
        %s172 = sadd.s32 %s170, %s171
        %s173 = scalar_lea.vmem %s1, %s172
        %s174 = smul.u32 2, %s17
      $region24: #{cbam_forward.3} parent=15 // pred_fallthru
        _
      // Predicated region
      $region25: #{cbam_forward.3} parent=15 // pred_check
        %p175 = pneg %p97
      $region26: #{cbam_forward.3} parent=15 // pred_check_branch
        %177 = sbr.rel (%p175) target = $region28
      $region27: #{cbam_forward.3} parent=15 // pred_region
        %p178 = scmp.lt.s32.totalorder %s16, 1
        %s179 = scalar_select %p178, %s16, 1
        %s180 = smul.addr %s179, 4
        %s181 = smul.addr %s180, 8
        %s182 = scalar_lea.vmem %s2, %s181
      $region28: #{cbam_forward.3} parent=15 // pred_fallthru
        _
    $region16: #{cbam_forward.3} parent=5 // pred_fallthru
      _
    %p183 = scmp.le.s32.totalorder 1, %s9
    %p184 = scmp.lt.s32.totalorder %s9, 3
    %p185 = pnand %p183, %p184
    %p186 = pneg %p185
    // Predicated region
    $region29: #{cbam_forward.3} parent=5 // pred_check
      _
    $region30: #{cbam_forward.3} parent=5 // pred_check_branch
      %188 = sbr.rel (%p185) target = $region32
    $region31: #{cbam_forward.3} parent=5 // pred_region
      %s189 = ssub.s32 %s9, 1
      %s190 = smul.u32 2, %s19
      %p191 = scmp.lt.s32.totalorder %s18, 1
      %s192 = scalar_select %p191, %s18, 1
      %p193 = scmp.lt.s32.totalorder %s190, 1
      %s194 = scalar_select %p193, %s190, 1
      %s195 = smul.addr %s192, 8
      %s196 = sadd.s32 %s194, %s195
      %s197 = smul.addr %s196, 8
      %s198 = scalar_lea.vmem %s0, %s197
      %p199 = pneg %p49
      %p200 = pneg %p46
      %s201 = smul.u32 2, %s19
      %p202 = scmp.lt.s32.totalorder %s18, 1
      %s203 = scalar_select %p202, %s18, 1
      %p204 = scmp.lt.s32.totalorder %s201, 1
      %s205 = scalar_select %p204, %s201, 1
      %s206 = smul.addr %s203, 2
      %s207 = sadd.s32 %s205, %s206
      %s208 = scalar_lea.vmem %s1, %s207
      %p209 = pneg %p77
      %p210 = pneg %p74
      %p211 = scmp.lt.s32.totalorder %s18, 1
      %s212 = scalar_select %p211, %s18, 1
      %s213 = smul.addr %s212, 4
      %s214 = smul.addr %s213, 8
      %s215 = scalar_lea.vmem %s2, %s214
      %p216 = pneg %p103
      %p217 = pneg %p100
      %p218 = pneg %p131
      %p219 = pneg %p128
      %s220 = smul.u32 2, %s19
      %p221 = scmp.lt.s32.totalorder %s18, 1
      %s222 = scalar_select %p221, %s18, 1
      %p223 = scmp.lt.s32.totalorder %s220, 1
      %s224 = scalar_select %p223, %s220, 1
      %s225 = smul.addr %s222, 8
      %s226 = sadd.s32 %s224, %s225
      %s227 = smul.addr %s226, 8
      %s228 = scalar_lea.vmem %s3, %s227
      %s229 = smul.u32 2, %s19
      %p230 = scmp.lt.s32.totalorder %s18, 1
      %s231 = scalar_select %p230, %s18, 1
      %p232 = scmp.lt.s32.totalorder %s229, 1
      %s233 = scalar_select %p232, %s229, 1
      %s234 = smul.addr %s231, 8
      %s235 = sadd.s32 %s233, %s234
      %s236 = smul.addr %s235, 8
      %s237 = scalar_lea.vmem %s0, %s236
      %s238 = smul.u32 2, %s19
      %s239 = smul.u32 2, %s19
      %p240 = scmp.lt.s32.totalorder %s18, 1
      %s241 = scalar_select %p240, %s18, 1
      %p242 = scmp.lt.s32.totalorder %s239, 1
      %s243 = scalar_select %p242, %s239, 1
      %s244 = smul.addr %s241, 2
      %s245 = sadd.s32 %s243, %s244
      %s246 = scalar_lea.vmem %s1, %s245
      %s247 = smul.u32 2, %s19
      %p248 = scmp.lt.s32.totalorder %s18, 1
      %s249 = scalar_select %p248, %s18, 1
      %s250 = smul.addr %s249, 4
      %s251 = smul.addr %s250, 8
      %s252 = scalar_lea.vmem %s2, %s251
      %s253 = smul.u32 2, %s19
      %p254 = scmp.lt.s32.totalorder %s18, 1
      %s255 = scalar_select %p254, %s18, 1
      %p256 = scmp.lt.s32.totalorder %s253, 1
      %s257 = scalar_select %p256, %s253, 1
      %s258 = smul.addr %s255, 8
      %s259 = sadd.s32 %s257, %s258
      %s260 = smul.addr %s259, 8
      %s261 = scalar_lea.vmem %s3, %s260
      %s262 = smul.u32 2, %s19
      %v263 = vld [vmem:[%s237] sm:$0xff]
      %v264 = vld [vmem:[%s237 + $0x8] sm:$0xff]
      %v265 = vld [vmem:[%s237 + $0x10] sm:$0xff]
      %v266 = vld [vmem:[%s237 + $0x18] sm:$0xff]
      %v267 = vld [vmem:[%s237 + $0x20] sm:$0xff]
      %v268 = vld [vmem:[%s237 + $0x28] sm:$0xff]
      %v269 = vld [vmem:[%s237 + $0x30] sm:$0xff]
      %v270 = vld [vmem:[%s237 + $0x38] sm:$0xff]
      %v271 = vld [vmem:[%s252] sm:$0xff]
      %v272 = vld [vmem:[%s252 + $0x8] sm:$0xff]
      %v273 = vld [vmem:[%s252 + $0x10] sm:$0xff]
      %v274 = vld [vmem:[%s252 + $0x18] sm:$0xff]
      %276 = vset.pattern.permute.xlu0 0
      %277 = vperm.xlu0 %276, %v271
      %v278 = vpop.permute.xlu0 %277
      %281 = vset.pattern.permute.xlu0 0
      %282 = vperm.xlu0 %281, %v272
      %v283 = vpop.permute.xlu0 %282
      %286 = vset.pattern.permute.xlu0 0
      %287 = vperm.xlu0 %286, %v273
      %v288 = vpop.permute.xlu0 %287
      %291 = vset.pattern.permute.xlu0 0
      %292 = vperm.xlu0 %291, %v274
      %v293 = vpop.permute.xlu0 %292
      %v295 = vmul.f32 %v263, %v278
      %v296 = vmul.f32 %v264, %v278
      %v297 = vmul.f32 %v265, %v283
      %v298 = vmul.f32 %v266, %v283
      %v299 = vmul.f32 %v267, %v288
      %v300 = vmul.f32 %v268, %v288
      %v301 = vmul.f32 %v269, %v293
      %v302 = vmul.f32 %v270, %v293
      %v303 = vld [vmem:[%s246] sm:$0x3]
      %v305 = vperm.slane %v303, 0
      %v306 = vperm.slane %v303, 1
      %v309 = vmul.f32 %v295, %v305
      %v310 = vmul.f32 %v296, %v306
      %v311 = vmul.f32 %v297, %v305
      %v312 = vmul.f32 %v298, %v306
      %v313 = vmul.f32 %v299, %v305
      %v314 = vmul.f32 %v300, %v306
      %v315 = vmul.f32 %v301, %v305
      %v316 = vmul.f32 %v302, %v306
      %v317 = vadd.f32 %v309, %v263
      %v318 = vadd.f32 %v310, %v264
      %v319 = vadd.f32 %v311, %v265
      %v320 = vadd.f32 %v312, %v266
      %v321 = vadd.f32 %v313, %v267
      %v322 = vadd.f32 %v314, %v268
      %v323 = vadd.f32 %v315, %v269
      %v324 = vadd.f32 %v316, %v270
      %325 = vst [vmem:[%s261] sm:$0xff] %v317
      %326 = vst [vmem:[%s261 + $0x8] sm:$0xff] %v318
      %327 = vst [vmem:[%s261 + $0x10] sm:$0xff] %v319
      %328 = vst [vmem:[%s261 + $0x18] sm:$0xff] %v320
      %329 = vst [vmem:[%s261 + $0x20] sm:$0xff] %v321
      %330 = vst [vmem:[%s261 + $0x28] sm:$0xff] %v322
      %331 = vst [vmem:[%s261 + $0x30] sm:$0xff] %v323
      %332 = vst [vmem:[%s261 + $0x38] sm:$0xff] %v324
      %s333 = smul.u32 2, %s19
      %p334 = scmp.lt.s32.totalorder %s18, 1
      %s335 = scalar_select %p334, %s18, 1
      %p336 = scmp.lt.s32.totalorder %s333, 1
      %s337 = scalar_select %p336, %s333, 1
      %s338 = smul.addr %s335, 8
      %s339 = sadd.s32 %s337, %s338
      %s340 = smul.addr %s339, 8
      %s341 = scalar_lea.vmem %s3, %s340
      // Predicated region
      $region33: #{cbam_forward.3} parent=31 // pred_check
        %p342 = pneg %p128
      $region34: #{cbam_forward.3} parent=31 // pred_check_branch
        %344 = sbr.rel (%p342) target = $region36
      $region35: #{cbam_forward.3} parent=31 // pred_region
        %s345 = smul.u32 2, %s19
      $region36: #{cbam_forward.3} parent=31 // pred_fallthru
        _
    $region32: #{cbam_forward.3} parent=5 // pred_fallthru
      _
    %p346 = scmp.le.s32.totalorder 2, %s9
    // Predicated region
    $region37: #{cbam_forward.3} parent=5 // pred_check
      %p347 = pneg %p346
    $region38: #{cbam_forward.3} parent=5 // pred_check_branch
      %349 = sbr.rel (%p347) target = $region40
    $region39: #{cbam_forward.3} parent=5 // pred_region
      %s350 = ssub.s32 %s9, 2
      // Predicated region
      $region41: #{cbam_forward.3} parent=39 // pred_check
        %p351 = pneg %p134
      $region42: #{cbam_forward.3} parent=39 // pred_check_branch
        %353 = sbr.rel (%p351) target = $region44
      $region43: #{cbam_forward.3} parent=39 // pred_region
        %s354 = smul.u32 2, %s21
        %p355 = scmp.lt.s32.totalorder %s20, 1
        %s356 = scalar_select %p355, %s20, 1
        %p357 = scmp.lt.s32.totalorder %s354, 1
        %s358 = scalar_select %p357, %s354, 1
        %s359 = smul.addr %s356, 8
        %s360 = sadd.s32 %s358, %s359
        %s361 = smul.addr %s360, 8
        %s362 = scalar_lea.vmem %s3, %s361
      $region44: #{cbam_forward.3} parent=39 // pred_fallthru
        _
    $region40: #{cbam_forward.3} parent=5 // pred_fallthru
      _
  $region6: #{cbam_forward.3} parent=0 // loop_footer
    %s13 = sadd.s32 1, %s9
  $region7: #{cbam_forward.3} parent=0 // loop_footer_branch
    %8 = sbr.rel target = $region3
  $region8: #{cbam_forward.3} parent=0 // loop_exit
    _

// kernel: cbam_forward.2
$region0: #{cbam_forward.2}
  #allocation0 [shape = 'u32[]', space=smem, size = 0x4, offset = 0x4, fixed_abs, tag = 'smem constant byte address 0x4 - core index']
  #allocation1 [shape = 'u32[72,128]{1,0:T(1,128)}', space=vmem, size = 0x9000, scoped, tag = 'internal scratch']
  %s0 = inlined_call_operand.vmem [shape: f32[2,32,256], index: 0, kind: input, shape index: {}]
  %s1 = inlined_call_operand.vmem [shape: f32[8,32], index: 1, kind: input, shape index: {}]
  %s2 = inlined_call_operand.vmem [shape: f32[32,8], index: 2, kind: input, shape index: {}]
  %s3 = inlined_call_operand.vmem [shape: f32[2,32,1], index: 3, kind: output, shape index: {0}]
  %s4 = inlined_call_operand.vmem [shape: f32[2,2,256], index: 4, kind: output, shape index: {1}]
  %5 = xla_tuple %s3, %s4
  %s6 = sld [smem:[#allocation0]]
  $region53: #{cbam_forward.2} parent=0
    _
  %s8 = ssub.s32 1, %s6
  %s9 = scalar_select 0, %s8, %s6
  loop: start=0, step=1, limit=4
  $region2: #{cbam_forward.2} parent=0 // loop_pre_header
    _
  $region3: #{cbam_forward.2} parent=0 // loop_header
    %s11 = sphi 0, %s15
    %p12 = scmp.ge.s32.totalorder %s11, 4
    %s21 = sphi 0, %s23
    %s24 = sphi 0, %s21
    %s25 = sphi 0, %s24
    %s41 = sphi 0, %s25
    %s45 = sphi 0, %s45
    %s47 = sphi 0, %s45
    %s48 = sphi 0, %s47
    %s62 = sphi 0, %s48
    %s66 = sphi 0, %s66
    %s68 = sphi 0, %s66
    %s69 = sphi 0, %s68
    %s83 = sphi 0, %s69
    %s89 = sphi 0, %s91
    %s92 = sphi 0, %s89
    %s93 = sphi 0, %s92
    %s109 = sphi 0, %s93
    %s115 = sphi 0, %s117
    %s118 = sphi 0, %s115
    %s119 = sphi 0, %s118
    %s135 = sphi 0, %s119
  $region4: #{cbam_forward.2} parent=0 // loop_header_branch
    %14 = sbr.rel (%p12) target = $region8
  $region5: #{cbam_forward.2} parent=0 // loop_body
    %s16 = ssub.s32 %s11, 1
    %s17 = ssub.s32 %s11, 2
    %s18 = sadd.s32 %s11, 1
    %s19 = ssub.s32 %s11, %s18
    %p20 = scmp.eq.s32.totalorder %s19, 0
    %s22 = sadd.s32 %s21, 1
    %s23 = scalar_select %p20, %s21, %s22
    %p26 = pneg %p20
    %p27 = scmp.eq.s32.totalorder %s11, 1
    %p28 = por %p26, %p27
    %p29 = scmp.ne.s32.totalorder %s21, %s24
    %p30 = scmp.eq.s32.totalorder %s11, 0
    %p31 = por %p29, %p30
    %p32 = scmp.ne.s32.totalorder %s21, %s24
    %p33 = scmp.eq.s32.totalorder %s16, 1
    %p34 = por %p32, %p33
    %p35 = scmp.ne.s32.totalorder %s24, %s25
    %p36 = scmp.eq.s32.totalorder %s16, 0
    %p37 = por %p35, %p36
    %p38 = scmp.ne.s32.totalorder %s24, %s25
    %p39 = scmp.eq.s32.totalorder %s17, 1
    %p40 = por %p38, %p39
    %p42 = scmp.ne.s32.totalorder %s25, %s41
    %p43 = scmp.eq.s32.totalorder %s17, 0
    %p44 = por %p42, %p43
    %s46 = sadd.s32 %s45, 1
    %p49 = scmp.eq.s32.totalorder %s11, 1
    %p50 = scmp.ne.s32.totalorder %s45, %s47
    %p51 = scmp.eq.s32.totalorder %s11, 0
    %p52 = por %p50, %p51
    %p53 = scmp.ne.s32.totalorder %s45, %s47
    %p54 = scmp.eq.s32.totalorder %s16, 1
    %p55 = por %p53, %p54
    %p56 = scmp.ne.s32.totalorder %s47, %s48
    %p57 = scmp.eq.s32.totalorder %s16, 0
    %p58 = por %p56, %p57
    %p59 = scmp.ne.s32.totalorder %s47, %s48
    %p60 = scmp.eq.s32.totalorder %s17, 1
    %p61 = por %p59, %p60
    %p63 = scmp.ne.s32.totalorder %s48, %s62
    %p64 = scmp.eq.s32.totalorder %s17, 0
    %p65 = por %p63, %p64
    %s67 = sadd.s32 %s66, 1
    %p70 = scmp.eq.s32.totalorder %s11, 1
    %p71 = scmp.ne.s32.totalorder %s66, %s68
    %p72 = scmp.eq.s32.totalorder %s11, 0
    %p73 = por %p71, %p72
    %p74 = scmp.ne.s32.totalorder %s66, %s68
    %p75 = scmp.eq.s32.totalorder %s16, 1
    %p76 = por %p74, %p75
    %p77 = scmp.ne.s32.totalorder %s68, %s69
    %p78 = scmp.eq.s32.totalorder %s16, 0
    %p79 = por %p77, %p78
    %p80 = scmp.ne.s32.totalorder %s68, %s69
    %p81 = scmp.eq.s32.totalorder %s17, 1
    %p82 = por %p80, %p81
    %p84 = scmp.ne.s32.totalorder %s69, %s83
    %p85 = scmp.eq.s32.totalorder %s17, 0
    %p86 = por %p84, %p85
    %s87 = ssub.s32 %s11, %s18
    %p88 = scmp.eq.s32.totalorder %s87, 0
    %s90 = sadd.s32 %s89, 1
    %s91 = scalar_select %p88, %s89, %s90
    %p94 = pneg %p88
    %p95 = scmp.eq.s32.totalorder %s11, 1
    %p96 = por %p94, %p95
    %p97 = scmp.ne.s32.totalorder %s89, %s92
    %p98 = scmp.eq.s32.totalorder %s11, 0
    %p99 = por %p97, %p98
    %p100 = scmp.ne.s32.totalorder %s89, %s92
    %p101 = scmp.eq.s32.totalorder %s16, 1
    %p102 = por %p100, %p101
    %p103 = scmp.ne.s32.totalorder %s92, %s93
    %p104 = scmp.eq.s32.totalorder %s16, 0
    %p105 = por %p103, %p104
    %p106 = scmp.ne.s32.totalorder %s92, %s93
    %p107 = scmp.eq.s32.totalorder %s17, 1
    %p108 = por %p106, %p107
    %p110 = scmp.ne.s32.totalorder %s93, %s109
    %p111 = scmp.eq.s32.totalorder %s17, 0
    %p112 = por %p110, %p111
    %s113 = ssub.s32 %s11, %s18
    %p114 = scmp.eq.s32.totalorder %s113, 0
    %s116 = sadd.s32 %s115, 1
    %s117 = scalar_select %p114, %s115, %s116
    %p120 = pneg %p114
    %p121 = scmp.eq.s32.totalorder %s11, 1
    %p122 = por %p120, %p121
    %p123 = scmp.ne.s32.totalorder %s115, %s118
    %p124 = scmp.eq.s32.totalorder %s11, 0
    %p125 = por %p123, %p124
    %p126 = scmp.ne.s32.totalorder %s115, %s118
    %p127 = scmp.eq.s32.totalorder %s16, 1
    %p128 = por %p126, %p127
    %p129 = scmp.ne.s32.totalorder %s118, %s119
    %p130 = scmp.eq.s32.totalorder %s16, 0
    %p131 = por %p129, %p130
    %p132 = scmp.ne.s32.totalorder %s118, %s119
    %p133 = scmp.eq.s32.totalorder %s17, 1
    %p134 = por %p132, %p133
    %p136 = scmp.ne.s32.totalorder %s119, %s135
    %p137 = scmp.eq.s32.totalorder %s17, 0
    %p138 = por %p136, %p137
    %p139 = scmp.le.s32.totalorder 1, %s11
    %p140 = scmp.lt.s32.totalorder %s11, 3
    %p141 = pnand %p139, %p140
    %p142 = pneg %p141
    // Predicated region
    $region9: #{cbam_forward.2} parent=5 // pred_check
      _
    $region10: #{cbam_forward.2} parent=5 // pred_check_branch
      %144 = sbr.rel (%p141) target = $region12
    $region11: #{cbam_forward.2} parent=5 // pred_region
      %s145 = ssub.s32 %s11, 1
      // Predicated region
      $region13: #{cbam_forward.2} parent=11 // pred_check
        %p146 = pneg %p58
      $region14: #{cbam_forward.2} parent=11 // pred_check_branch
        %148 = sbr.rel (%p146) target = $region16
      $region15: #{cbam_forward.2} parent=11 // pred_region
        _
      $region16: #{cbam_forward.2} parent=11 // pred_fallthru
        _
      // Predicated region
      $region17: #{cbam_forward.2} parent=11 // pred_check
        %p149 = pneg %p79
      $region18: #{cbam_forward.2} parent=11 // pred_check_branch
        %151 = sbr.rel (%p149) target = $region20
      $region19: #{cbam_forward.2} parent=11 // pred_region
        _
      $region20: #{cbam_forward.2} parent=11 // pred_fallthru
        _
    $region12: #{cbam_forward.2} parent=5 // pred_fallthru
      _
    %p152 = scmp.lt.s32.totalorder %s11, 2
    // Predicated region
    $region21: #{cbam_forward.2} parent=5 // pred_check
      %p153 = pneg %p152
    $region22: #{cbam_forward.2} parent=5 // pred_check_branch
      %155 = sbr.rel (%p153) target = $region24
    $region23: #{cbam_forward.2} parent=5 // pred_region
      // Predicated region
      $region25: #{cbam_forward.2} parent=23 // pred_check
        %p156 = pneg %p31
      $region26: #{cbam_forward.2} parent=23 // pred_check_branch
        %158 = sbr.rel (%p156) target = $region28
      $region27: #{cbam_forward.2} parent=23 // pred_region
        %p159 = scmp.lt.s32.totalorder %s11, 1
        %s160 = scalar_select %p159, %s11, 1
        %s161 = smul.addr %s160, 8
        %s162 = smul.addr %s161, 8
        %s163 = scalar_lea.vmem %s0, %s162
      $region28: #{cbam_forward.2} parent=23 // pred_fallthru
        _
    $region24: #{cbam_forward.2} parent=5 // pred_fallthru
      _
    %p164 = scmp.le.s32.totalorder 1, %s11
    %p165 = scmp.lt.s32.totalorder %s11, 3
    %p166 = pnand %p164, %p165
    %p167 = pneg %p166
    // Predicated region
    $region29: #{cbam_forward.2} parent=5 // pred_check
      _
    $region30: #{cbam_forward.2} parent=5 // pred_check_branch
      %169 = sbr.rel (%p166) target = $region32
    $region31: #{cbam_forward.2} parent=5 // pred_region
      %s170 = ssub.s32 %s11, 1
      %p171 = scmp.lt.s32.totalorder %s16, 1
      %s172 = scalar_select %p171, %s16, 1
      %s173 = smul.addr %s172, 8
      %s174 = smul.addr %s173, 8
      %s175 = scalar_lea.vmem %s0, %s174
      %p176 = pneg %p37
      %p177 = pneg %p34
      %p178 = pneg %p58
      %p179 = pneg %p55
      %p180 = pneg %p79
      %p181 = pneg %p76
      %p182 = pneg %p105
      %p183 = pneg %p102
      %p184 = scmp.lt.s32.totalorder %s16, 1
      %s185 = scalar_select %p184, %s16, 1
      %s186 = smul.addr %s185, 4
      %s187 = smul.addr %s186, 8
      %s188 = scalar_lea.vmem %s3, %s187
      %p189 = pneg %p131
      %p190 = pneg %p128
      %p191 = scmp.lt.s32.totalorder %s16, 1
      %s192 = scalar_select %p191, %s16, 1
      %s193 = smul.addr %s192, 2
      %s194 = smul.addr %s193, 2
      %s195 = scalar_lea.vmem %s4, %s194
      %p196 = scmp.lt.s32.totalorder %s16, 1
      %s197 = scalar_select %p196, %s16, 1
      %s198 = smul.addr %s197, 8
      %s199 = smul.addr %s198, 8
      %s200 = scalar_lea.vmem %s0, %s199
      %p201 = scmp.lt.s32.totalorder %s16, 1
      %s202 = scalar_select %p201, %s16, 1
      %s203 = smul.addr %s202, 4
      %s204 = smul.addr %s203, 8
      %s205 = scalar_lea.vmem %s3, %s204
      %p206 = scmp.lt.s32.totalorder %s16, 1
      %s207 = scalar_select %p206, %s16, 1
      %s208 = smul.addr %s207, 2
      %s209 = smul.addr %s208, 2
      %s210 = scalar_lea.vmem %s4, %s209
      %v211 = vld [vmem:[%s200] sm:$0xff]
      %v212 = vld [vmem:[%s200 + $0x8] sm:$0xff]
      %v213 = vld [vmem:[%s200 + $0x10] sm:$0xff]
      %v214 = vld [vmem:[%s200 + $0x18] sm:$0xff]
      %v215 = vld [vmem:[%s200 + $0x20] sm:$0xff]
      %v216 = vld [vmem:[%s200 + $0x28] sm:$0xff]
      %v217 = vld [vmem:[%s200 + $0x30] sm:$0xff]
      %v218 = vld [vmem:[%s200 + $0x38] sm:$0xff]
      %v219 = vld [vmem:[%s1] sm:$0xff]
      %v220 = vld [vmem:[%s2] sm:$0xff]
      %v221 = vld [vmem:[%s2 + $0x8] sm:$0xff]
      %v222 = vld [vmem:[%s2 + $0x10] sm:$0xff]
      %v223 = vld [vmem:[%s2 + $0x18] sm:$0xff]
      %v224 = vmax.f32 %v211, %v212
      %225 = vmax.xlane.f32.xlu0 %v224
      %v226 = vpop.xlane.xlu0 %225
      %v227 = vmax.f32 %v213, %v214
      %228 = vmax.xlane.f32.xlu0 %v227
      %v229 = vpop.xlane.xlu0 %228
      %v230 = vmax.f32 %v215, %v216
      %231 = vmax.xlane.f32.xlu0 %v230
      %v232 = vpop.xlane.xlu0 %231
      %v233 = vmax.f32 %v217, %v218
      %234 = vmax.xlane.f32.xlu0 %v233
      %v235 = vpop.xlane.xlu0 %234
      %v236 = vadd.f32 %v211, %v212
      %237 = vadd.xlane.f32.xlu0 %v236
      %v238 = vpop.xlane.xlu0 %237
      %v239 = vadd.f32 %v213, %v214
      %240 = vadd.xlane.f32.xlu0 %v239
      %v241 = vpop.xlane.xlu0 %240
      %v242 = vadd.f32 %v215, %v216
      %243 = vadd.xlane.f32.xlu0 %v242
      %v244 = vpop.xlane.xlu0 %243
      %v245 = vadd.f32 %v217, %v218
      %246 = vadd.xlane.f32.xlu0 %v245
      %v247 = vpop.xlane.xlu0 %246
      %v248 = vrcp.pop 256.0
      %v249 = vmul.f32 256.0, %v248
      %v250 = vsub.f32 1.0, %v249
      %v251 = vmul.f32 %v248, %v250
      %v252 = vadd.f32 %v248, %v251
      %vm253 = vweird.f32 %v248
      %v254 = vsel %vm253, %v248, %v252
      %v255 = vmul.f32 %v238, %v254
      %v256 = vmul.f32 %v241, %v254
      %v257 = vmul.f32 %v244, %v254
      %v258 = vmul.f32 %v247, %v254
      %vm259 = vcmask 7168
      %v260 = vsel %vm259, %v226, %v255
      %v261 = vsel %vm259, %v229, %v256
      %v262 = vsel %vm259, %v232, %v257
      %v263 = vsel %vm259, %v235, %v258
      %vm264 = vcmask 261120
      %v266 = vsel %vm264, %v219, 0
      %268 = vmatpush.msra.mxu0 0.0
      %269 = vmatpush.msra.mxu0 0.0
      %270 = vmatpush.msra.mxu0 0.0
      %271 = vmatpush.msra.mxu0 0.0
      %272 = vmatpush.msra.mxu0 0.0
      %273 = vmatpush.msra.mxu0 0.0
      %274 = vmatpush.msra.mxu0 0.0
      %275 = vmatpush.msra.mxu0 0.0
      %276 = vmatpush.msra.mxu0 0.0
      %277 = vmatpush.msra.mxu0 0.0
      %278 = vmatpush.msra.mxu0 0.0
      %279 = vmatpush.msra.mxu0 0.0
      %280 = vmatpush.msra.mxu0 %v263
      %281 = vmatpush.msra.mxu0 %v262
      %282 = vmatpush.msra.mxu0 %v261
      %283 = vmatpush.msra.mxu0 %v260
      %284 = vmatmul.f32.gmra.mxu0 %v266
      %v285 = vpop.f32.mrf.mxu0
      %v286 = vadd.f32 0.0, %v285
      %287 = vdwg.mxu0
      %v288 = vadd.f32 %v286, 3.0
      %v289 = vmax.f32 %v288, 0.0
      %v290 = vmin.f32 %v289, 6.0
      %v291 = vmul.f32 %v286, %v290
      %v292 = vmul.f32 %v291, 0.16666667
      %vm293 = vcmask 64512
      %v295 = vsel %vm293, %v220, 0
      %v298 = vsel %vm293, %v221, 0
      %v301 = vsel %vm293, %v222, 0
      %v304 = vsel %vm293, %v223, 0
      %306 = vmatpush.msra.mxu0 0.0
      %307 = vmatpush.msra.mxu0 0.0
      %308 = vmatpush.msra.mxu0 0.0
      %309 = vmatpush.msra.mxu0 0.0
      %310 = vmatpush.msra.mxu0 0.0
      %311 = vmatpush.msra.mxu0 0.0
      %312 = vmatpush.msra.mxu0 0.0
      %313 = vmatpush.msra.mxu0 0.0
      %314 = vmatpush.msra.mxu0 0.0
      %315 = vmatpush.msra.mxu0 0.0
      %316 = vmatpush.msra.mxu0 0.0
      %317 = vmatpush.msra.mxu0 0.0
      %318 = vmatpush.msra.mxu0 0.0
      %319 = vmatpush.msra.mxu0 0.0
      %320 = vmatpush.msra.mxu0 0.0
      %321 = vmatpush.msra.mxu0 %v292
      %322 = vmatmul.f32.gmra.mxu0 %v295
      %v323 = vpop.f32.mrf.mxu0
      %v324 = vadd.f32 0.0, %v323
      %325 = vmatmul.f32.gmra.mxu0 %v298
      %v326 = vpop.f32.mrf.mxu0
      %v327 = vadd.f32 0.0, %v326
      %328 = vmatmul.f32.gmra.mxu0 %v301
      %v329 = vpop.f32.mrf.mxu0
      %v330 = vadd.f32 0.0, %v329
      %331 = vmatmul.f32.gmra.mxu0 %v304
      %v332 = vpop.f32.mrf.mxu0
      %v333 = vadd.f32 0.0, %v332
      %334 = vdwg.mxu0
      %vm335 = vcmask 15360
      %v336 = vsel %vm335, %v324, 0.0
      %337 = vadd.xlane.f32.xlu0 %v336
      %v338 = vpop.xlane.xlu0 %337
      %v339 = vsel %vm335, %v327, 0.0
      %340 = vadd.xlane.f32.xlu0 %v339
      %v341 = vpop.xlane.xlu0 %340
      %v342 = vsel %vm335, %v330, 0.0
      %343 = vadd.xlane.f32.xlu0 %v342
      %v344 = vpop.xlane.xlu0 %343
      %v345 = vsel %vm335, %v333, 0.0
      %346 = vadd.xlane.f32.xlu0 %v345
      %v347 = vpop.xlane.xlu0 %346
      %v348 = vxor.u32 %v338, 2147483648
      %v349 = vxor.u32 %v341, 2147483648
      %v350 = vxor.u32 %v344, 2147483648
      %v351 = vxor.u32 %v347, 2147483648
      %v352 = vmul.f32 %v348, 1.442695
      %v353 = vpow.pop %v352
      %v354 = vmul.f32 %v349, 1.442695
      %v355 = vpow.pop %v354
      %v356 = vmul.f32 %v350, 1.442695
      %v357 = vpow.pop %v356
      %v358 = vmul.f32 %v351, 1.442695
      %v359 = vpow.pop %v358
      %v360 = vadd.f32 %v353, 1.0
      %v361 = vadd.f32 %v355, 1.0
      %v362 = vadd.f32 %v357, 1.0
      %v363 = vadd.f32 %v359, 1.0
      %v364 = vrcp.pop %v360
      %v365 = vmul.f32 %v360, %v364
      %v366 = vsub.f32 1.0, %v365
      %v367 = vmul.f32 %v364, %v366
      %v368 = vadd.f32 %v364, %v367
      %vm369 = vweird.f32 %v360
      %vm370 = vweird.f32 %v364
      %vm371 = vmor %vm369, %vm370
      %v372 = vsel %vm371, %v364, %v368
      %v373 = vand.u32 2147483647, %v360
      %vm374 = vcmp.eq.f32.partialorder %v373, 8.507059e+37
      %v375 = vand.u32 %v360, 2147483648
      %v376 = vor.u32 1.1754944e-38, %v375
      %v377 = vsel %vm374, %v376, %v372
      %v378 = vmul.f32 1.0, %v377
      %v379 = vrcp.pop %v361
      %v380 = vmul.f32 %v361, %v379
      %v381 = vsub.f32 1.0, %v380
      %v382 = vmul.f32 %v379, %v381
      %v383 = vadd.f32 %v379, %v382
      %vm384 = vweird.f32 %v361
      %vm385 = vweird.f32 %v379
      %vm386 = vmor %vm384, %vm385
      %v387 = vsel %vm386, %v379, %v383
      %v388 = vand.u32 2147483647, %v361
      %vm389 = vcmp.eq.f32.partialorder %v388, 8.507059e+37
      %v390 = vand.u32 %v361, 2147483648
      %v391 = vor.u32 1.1754944e-38, %v390
      %v392 = vsel %vm389, %v391, %v387
      %v393 = vmul.f32 1.0, %v392
      %v394 = vrcp.pop %v362
      %v395 = vmul.f32 %v362, %v394
      %v396 = vsub.f32 1.0, %v395
      %v397 = vmul.f32 %v394, %v396
      %v398 = vadd.f32 %v394, %v397
      %vm399 = vweird.f32 %v362
      %vm400 = vweird.f32 %v394
      %vm401 = vmor %vm399, %vm400
      %v402 = vsel %vm401, %v394, %v398
      %v403 = vand.u32 2147483647, %v362
      %vm404 = vcmp.eq.f32.partialorder %v403, 8.507059e+37
      %v405 = vand.u32 %v362, 2147483648
      %v406 = vor.u32 1.1754944e-38, %v405
      %v407 = vsel %vm404, %v406, %v402
      %v408 = vmul.f32 1.0, %v407
      %v409 = vrcp.pop %v363
      %v410 = vmul.f32 %v363, %v409
      %v411 = vsub.f32 1.0, %v410
      %v412 = vmul.f32 %v409, %v411
      %v413 = vadd.f32 %v409, %v412
      %vm414 = vweird.f32 %v363
      %vm415 = vweird.f32 %v409
      %vm416 = vmor %vm414, %vm415
      %v417 = vsel %vm416, %v409, %v413
      %v418 = vand.u32 2147483647, %v363
      %vm419 = vcmp.eq.f32.partialorder %v418, 8.507059e+37
      %v420 = vand.u32 %v363, 2147483648
      %v421 = vor.u32 1.1754944e-38, %v420
      %v422 = vsel %vm419, %v421, %v417
      %v423 = vmul.f32 1.0, %v422
      %424 = vst.msk [vmem:[%s205] sm:$0xff] %vm259, %v378
      %425 = vst.msk [vmem:[%s205 + $0x8] sm:$0xff] %vm259, %v393
      %426 = vst.msk [vmem:[%s205 + $0x10] sm:$0xff] %vm259, %v408
      %427 = vst.msk [vmem:[%s205 + $0x18] sm:$0xff] %vm259, %v423
      %v428 = vmul.f32 %v211, %v378
      %v429 = vmul.f32 %v212, %v378
      %v430 = vmul.f32 %v213, %v393
      %v431 = vmul.f32 %v214, %v393
      %v432 = vmul.f32 %v215, %v408
      %v433 = vmul.f32 %v216, %v408
      %v434 = vmul.f32 %v217, %v423
      %v435 = vmul.f32 %v218, %v423
      %v436 = vmax.f32 %v428, %v432
      %v437 = vmax.f32 %v430, %v434
      %v438 = vmax.f32 %v436, %v437
      %v439 = vrot.slane %v438, 4
      %v440 = vmax.f32 %v438, %v439
      %v441 = vrot.slane %v440, 2
      %v442 = vmax.f32 %v440, %v441
      %v443 = vrot.slane %v442, 1
      %v444 = vmax.f32 %v442, %v443
      %v445 = vmax.f32 %v429, %v433
      %v446 = vmax.f32 %v431, %v435
      %v447 = vmax.f32 %v445, %v446
      %v448 = vrot.slane %v447, 4
      %v449 = vmax.f32 %v447, %v448
      %v450 = vrot.slane %v449, 2
      %v451 = vmax.f32 %v449, %v450
      %v452 = vrot.slane %v451, 1
      %v453 = vmax.f32 %v451, %v452
      %v456 = vrot.slane %v453, 7
      %vm457 = vcmask 1040384
      %v458 = vsel %vm457, %v444, %v456
      %v460 = vlaneseq
      %vm461 = vcmp.ge.s32.totalorder %v460, 0
      %vm462 = vcmp.lt.s32.totalorder %v460, 256
      %vm463 = vmand %vm461, %vm462
      %464 = vst.msk [vmem:[%s210] ss:$2 sm:$0x3] %vm463, %v458
      %v465 = vadd.f32 %v428, %v430
      %v466 = vadd.f32 %v465, %v432
      %v467 = vadd.f32 %v466, %v434
      %v468 = vrot.slane %v467, 4
      %v469 = vadd.f32 %v467, %v468
      %v470 = vrot.slane %v469, 2
      %v471 = vadd.f32 %v469, %v470
      %v472 = vrot.slane %v471, 1
      %v473 = vadd.f32 %v471, %v472
      %v474 = vadd.f32 %v429, %v431
      %v475 = vadd.f32 %v474, %v433
      %v476 = vadd.f32 %v475, %v435
      %v477 = vrot.slane %v476, 4
      %v478 = vadd.f32 %v476, %v477
      %v479 = vrot.slane %v478, 2
      %v480 = vadd.f32 %v478, %v479
      %v481 = vrot.slane %v480, 1
      %v482 = vadd.f32 %v480, %v481
      %v483 = vrcp.pop 32.0
      %v484 = vmul.f32 32.0, %v483
      %v485 = vsub.f32 1.0, %v484
      %v486 = vmul.f32 %v483, %v485
      %v487 = vadd.f32 %v483, %v486
      %vm488 = vweird.f32 %v483
      %v489 = vsel %vm488, %v483, %v487
      %v490 = vmul.f32 %v473, %v489
      %v491 = vmul.f32 %v482, %v489
      %v494 = vrot.slane %v491, 7
      %v495 = vsel %vm457, %v490, %v494
      %s497 = scalar_lea.vmem %s210, 1
      %498 = vst.msk [vmem:[%s497] ss:$2 sm:$0x3] %vm463, %v495
      %p499 = scmp.lt.s32.totalorder %s16, 1
      %s500 = scalar_select %p499, %s16, 1
      %s501 = smul.addr %s500, 4
      %s502 = smul.addr %s501, 8
      %s503 = scalar_lea.vmem %s3, %s502
      %p504 = scmp.lt.s32.totalorder %s16, 1
      %s505 = scalar_select %p504, %s16, 1
      %s506 = smul.addr %s505, 2
      %s507 = smul.addr %s506, 2
      %s508 = scalar_lea.vmem %s4, %s507
      // Predicated region
      $region33: #{cbam_forward.2} parent=31 // pred_check
        %p509 = pneg %p102
      $region34: #{cbam_forward.2} parent=31 // pred_check_branch
        %511 = sbr.rel (%p509) target = $region36
      $region35: #{cbam_forward.2} parent=31 // pred_region
        _
      $region36: #{cbam_forward.2} parent=31 // pred_fallthru
        _
      // Predicated region
      $region37: #{cbam_forward.2} parent=31 // pred_check
        %p512 = pneg %p128
      $region38: #{cbam_forward.2} parent=31 // pred_check_branch
        %514 = sbr.rel (%p512) target = $region40
      $region39: #{cbam_forward.2} parent=31 // pred_region
        _
      $region40: #{cbam_forward.2} parent=31 // pred_fallthru
        _
    $region32: #{cbam_forward.2} parent=5 // pred_fallthru
      _
    %p515 = scmp.le.s32.totalorder 2, %s11
    // Predicated region
    $region41: #{cbam_forward.2} parent=5 // pred_check
      %p516 = pneg %p515
    $region42: #{cbam_forward.2} parent=5 // pred_check_branch
      %518 = sbr.rel (%p516) target = $region44
    $region43: #{cbam_forward.2} parent=5 // pred_region
      %s519 = ssub.s32 %s11, 2
      // Predicated region
      $region45: #{cbam_forward.2} parent=43 // pred_check
        %p520 = pneg %p108
      $region46: #{cbam_forward.2} parent=43 // pred_check_branch
        %522 = sbr.rel (%p520) target = $region48
      $region47: #{cbam_forward.2} parent=43 // pred_region
        %p523 = scmp.lt.s32.totalorder %s17, 1
        %s524 = scalar_select %p523, %s17, 1
        %s525 = smul.addr %s524, 4
        %s526 = smul.addr %s525, 8
        %s527 = scalar_lea.vmem %s3, %s526
      $region48: #{cbam_forward.2} parent=43 // pred_fallthru
        _
      // Predicated region
      $region49: #{cbam_forward.2} parent=43 // pred_check
        %p528 = pneg %p134
      $region50: #{cbam_forward.2} parent=43 // pred_check_branch
        %530 = sbr.rel (%p528) target = $region52
      $region51: #{cbam_forward.2} parent=43 // pred_region
        %p531 = scmp.lt.s32.totalorder %s17, 1
        %s532 = scalar_select %p531, %s17, 1
        %s533 = smul.addr %s532, 2
        %s534 = smul.addr %s533, 2
        %s535 = scalar_lea.vmem %s4, %s534
      $region52: #{cbam_forward.2} parent=43 // pred_fallthru
        _
    $region44: #{cbam_forward.2} parent=5 // pred_fallthru
      _
  $region6: #{cbam_forward.2} parent=0 // loop_footer
    %s15 = sadd.s32 1, %s11
  $region7: #{cbam_forward.2} parent=0 // loop_footer_branch
    %10 = sbr.rel target = $region3
  $region8: #{cbam_forward.2} parent=0 // loop_exit
    _

</llo_original>
